<compile_context>
chip_gen: v7x
topology: tpu7x:2x2x1
jax: 0.10.0
libtpu: 0.0.40
codegen_flags: <defaults>
</compile_context>

<pallas_src>
import functools

import jax
import jax.numpy as jnp
from jax.experimental import pallas as pl
from jax.experimental.pallas import tpu as pltpu


def _attention_kernel(x_ref, w1_ref, b1_ref, w2_ref, b2_ref, o_ref, *, l_valid):
    tb, l_pad, input_dim = x_ref.shape          # x block: (TB, Lp, input_dim) f32
    n_heads = o_ref.shape[1]                    # out block: (TB, n_heads, Lp) f32

    # ---- fc1 + tanh -----------------------------------------------------------
    # x arrives f32 from HBM (no separate wrapper cast pass); cast to bf16 just
    # before the MXU (documented accuracy/throughput tradeoff), accumulate in f32.
    # Reshape (TB, Lp) -> TB*Lp rows is free because Lp % 8 == 0 (wrapper pads).
    x2d = x_ref[...].reshape(tb * l_pad, input_dim).astype(jnp.bfloat16)
    h = jnp.dot(x2d, w1_ref[...], preferred_element_type=jnp.float32)
    h = jnp.tanh(h + b1_ref[...])                               # (TB*Lp, dense) f32

    # ---- fc2 (tiny K/N: keep h in f32 — no extra VPU cast, better logits) ------
    s = jnp.dot(h, w2_ref[...], preferred_element_type=jnp.float32) + b2_ref[...]
    s = s.reshape(tb, l_pad, n_heads)

    # ---- transpose BEFORE the softmax so L sits in the lane dimension ----------
    # Same single XLU transpose as before, but the softmax below is now lane-dense.
    st = jnp.transpose(s, (0, 2, 1))                            # (TB, n_heads, Lp)

    if l_valid != l_pad:                        # mask padded sequence positions
        lane = jax.lax.broadcasted_iota(jnp.int32, st.shape, 2)
        st = jnp.where(lane < l_valid, st, -jnp.inf)

    # ---- softmax over the sequence axis (== torch softmax(x, dim=1)) -----------
    m = jnp.max(st, axis=-1, keepdims=True)
    e = jnp.exp(st - m)
    denom = jnp.sum(e, axis=-1, keepdims=True)
    # NOTE: approx reciprocal (EUP) -> rows sum to 1 within ~1e-3/1e-4 rel. error.
    p = e * pl.reciprocal(denom, approx=True)

    # ---- store already transposed, lane-dense: (TB, n_heads, Lp) ---------------
    o_ref[...] = p.astype(o_ref.dtype)


def _vmem_caps():
    """Generation-aware (tiling_budget_bytes, scoped_vmem_limit_bytes)."""
    cap = 64 * 1024 * 1024                      # conservative default (v7x per-TC)
    try:
        info = pltpu.get_tpu_info()
        cap = int(getattr(info, "vmem_capacity_bytes", cap)) or cap
    except Exception:
        pass
    cap = max(64 * 1024 * 1024, min(cap, 128 * 1024 * 1024))
    budget = (cap * 3) // 4                     # ~48 MiB on v7x, ~96 MiB on v5e/v6e
    limit = max(32 * 1024 * 1024,
                min(cap - 8 * 1024 * 1024, (cap * 7) // 8))
    return budget, limit


def _choose_batch_tile(B, l_pad, input_dim, dense_dim, n_heads, vmem_budget,
                       min_x_bytes=4 * 1024 * 1024,
                       min_split_x_bytes=2 * 1024 * 1024):
    """Batch tile sized by DMA bytes (>= min_x_bytes of x per step) under a VMEM
    budget (double-buffered x/out blocks + weights + f32 intermediates)."""
    x_row = l_pad * input_dim * 4               # f32 x bytes per batch element
    # Per-batch-element VMEM: 2x-buffered x + out blocks, plus live intermediates
    # (bf16 x copy, h, s, st, e, p).
    per_b = (2 * (l_pad * input_dim * 4 + n_heads * l_pad * 4)
             + l_pad * input_dim * 2
             + l_pad * (dense_dim + 4 * n_heads) * 4)
    fixed = 2 * (input_dim * dense_dim * 2 + dense_dim * n_heads * 4
                 + (dense_dim + n_heads) * 4)
    tb_budget = max(1, (vmem_budget - fixed) // per_b)
    tb = min(B, max(1, pl.cdiv(min_x_bytes, x_row)), tb_budget)
    # Megacore (v7x): only force >= 2 grid steps if each half still moves
    # >= ~min_split_x_bytes of x; otherwise the per-step overhead loses more
    # than the second TensorCore recovers (and v5e/v6e have 1 TC anyway).
    if B >= 2 and pl.cdiv(B, tb) < 2 and pl.cdiv(B, 2) * x_row >= min_split_x_bytes:
        tb = pl.cdiv(B, 2)
    return tb


def attention_forward(x, w1, b1, w2, b2, *, batch_tile=None,
                      vmem_budget_bytes=None, vmem_limit_bytes=None):
    """x: (B, L, input_dim) f32. w1: (input_dim, dense_dim), b1: (dense_dim,),
    w2: (dense_dim, n_heads), b2: (n_heads,). Returns (B, n_heads, L) f32."""
    B, L, input_dim = x.shape
    dense_dim = w1.shape[1]
    n_heads = w2.shape[1]

    budget, limit = _vmem_caps()
    if vmem_budget_bytes is not None:
        budget = vmem_budget_bytes
    if vmem_limit_bytes is not None:
        limit = vmem_limit_bytes

    # Pad L to a sublane multiple so the (TB, Lp)->TB*Lp reshape stays free and
    # batch tiles stay large for any L; padded positions are masked to -inf in
    # the kernel's softmax and sliced off below (output is tiny vs x traffic).
    l_pad = ((L + 7) // 8) * 8
    x = x.astype(jnp.float32)                   # no-op if already f32
    if l_pad != L:
        x = jnp.pad(x, ((0, 0), (0, l_pad - L), (0, 0)))

    tb = batch_tile if batch_tile is not None else _choose_batch_tile(
        B, l_pad, input_dim, dense_dim, n_heads, budget)
    grid = (pl.cdiv(B, tb),)

    # Weights/biases are tiny & constant across grid steps: bf16 w1 (matches the
    # in-kernel bf16 x), f32 w2/biases (fc2 stays f32).
    w1_bf = w1.astype(jnp.bfloat16)
    b1_f = b1.reshape(1, dense_dim).astype(jnp.float32)
    w2_f = w2.astype(jnp.float32)
    b2_f = b2.reshape(1, n_heads).astype(jnp.float32)

    kernel = functools.partial(_attention_kernel, l_valid=L)

    # NOTE: the weight/bias index_maps are constant, so they are fetched once; for
    # very large dense_dim, pipeline_mode=pl.Buffered(1) on those specs reclaims
    # the second buffer's VMEM for a bigger batch tile (not needed at these sizes).
    out = pl.pallas_call(
        kernel,
        out_shape=jax.ShapeDtypeStruct((B, n_heads, l_pad), jnp.float32),
        grid_spec=pltpu.PrefetchScalarGridSpec(
            num_scalar_prefetch=0,
            grid=grid,
            in_specs=[
                pl.BlockSpec((tb, l_pad, input_dim), lambda i: (i, 0, 0)),
                pl.BlockSpec((input_dim, dense_dim), lambda i: (0, 0)),
                pl.BlockSpec((1, dense_dim), lambda i: (0, 0)),
                pl.BlockSpec((dense_dim, n_heads), lambda i: (0, 0)),
                pl.BlockSpec((1, n_heads), lambda i: (0, 0)),
            ],
            out_specs=pl.BlockSpec((tb, n_heads, l_pad), lambda i: (i, 0, 0)),
        ),
        compiler_params=pltpu.CompilerParams(
            dimension_semantics=("parallel",),
            vmem_limit_bytes=limit,
        ),
    )(x, w1_bf, b1_f, w2_f, b2_f)

    if l_pad != L:
        out = out[:, :, :L]
    return out


def _reference_matched(x, w1, b1, w2, b2):
    # Same recipe as the kernel (bf16 fc1 operands / f32 acc, f32 fc2, exact divide).
    h = jnp.tanh(
        jnp.einsum("bli,id->bld", x.astype(jnp.bfloat16), w1.astype(jnp.bfloat16),
                   preferred_element_type=jnp.float32) + b1)
    s = jnp.einsum("bld,dh->blh", h, w2.astype(jnp.float32),
                   preferred_element_type=jnp.float32) + b2
    p = jax.nn.softmax(s, axis=1)
    return jnp.transpose(p, (0, 2, 1))


def _reference_f32(x, w1, b1, w2, b2):
    h = jnp.tanh(x @ w1 + b1)              # (B, L, dense_dim)
    s = h @ w2 + b2                        # (B, L, n_heads)
    p = jax.nn.softmax(s, axis=1)          # softmax over sequence axis
    return jnp.transpose(p, (0, 2, 1))     # (B, n_heads, L)


if __name__ == "__main__":
    # Small shapes consistent with the module's forward.
    B, L = 2, 8
    input_dim, dense_dim, n_heads = 32, 16, 4

    key = jax.random.PRNGKey(0)
    kx, kw1, kb1, kw2, kb2 = jax.random.split(key, 5)

    x = jax.random.normal(kx, (B, L, input_dim), dtype=jnp.float32)

    # Deterministic parameter init (PyTorch-Linear-style uniform bounds).
    bound1 = 1.0 / (input_dim ** 0.5)
    bound2 = 1.0 / (dense_dim ** 0.5)
    # Weights stored already transposed: (in_features, out_features).
    w1 = jax.random.uniform(kw1, (input_dim, dense_dim), jnp.float32, -bound1, bound1)
    b1 = jax.random.uniform(kb1, (dense_dim,), jnp.float32, -bound1, bound1)
    w2 = jax.random.uniform(kw2, (dense_dim, n_heads), jnp.float32, -bound2, bound2)
    b2 = jax.random.uniform(kb2, (n_heads,), jnp.float32, -bound2, bound2)

    out = jax.block_until_ready(attention_forward(x, w1, b1, w2, b2))
    assert out.shape == (B, n_heads, L), out.shape

    ref_m = _reference_matched(x, w1, b1, w2, b2)   # bf16-fc1 matched reference
    ref_f = _reference_f32(x, w1, b1, w2, b2)       # full-f32 reference
    err_m = float(jnp.max(jnp.abs(out - ref_m)))
    err_f = float(jnp.max(jnp.abs(out - ref_f)))
    assert jnp.allclose(out, ref_m, atol=1e-2, rtol=1e-2), f"mismatch vs matched ref: {err_m}"
    assert jnp.allclose(out, ref_f, atol=2e-2, rtol=2e-2), f"mismatch vs f32 ref: {err_f}"

    print("KERNEL_OK")
</pallas_src>

<mosaic_0001>
module attributes {stable_mosaic.version = 11 : i64} {
  func.func @_attention_kernel(%arg0: i32, %arg1: memref<2x8x32xf32, #tpu.memory_space<vmem>>, %arg2: memref<32x16xbf16, #tpu.memory_space<vmem>>, %arg3: memref<1x16xf32, #tpu.memory_space<vmem>>, %arg4: memref<16x4xf32, #tpu.memory_space<vmem>>, %arg5: memref<1x4xf32, #tpu.memory_space<vmem>>, %arg6: memref<2x4x8xf32, #tpu.memory_space<vmem>>) attributes {dimension_semantics = [#tpu.dimension_semantics<parallel>], iteration_bounds = array<i64: 1>, scalar_prefetch = 0 : i64, scratch_operands = 0 : i64, tpu.core_type = #tpu.core_type<tc>, window_params = [{transform_indices = @transform_0, window_bounds = array<i64: 2, 8, 32>}, {pipeline_mode = #tpu.pipeline_mode<synchronous>, transform_indices = @transform_1, window_bounds = array<i64: 32, 16>}, {pipeline_mode = #tpu.pipeline_mode<synchronous>, transform_indices = @transform_2, window_bounds = array<i64: 1, 16>}, {pipeline_mode = #tpu.pipeline_mode<synchronous>, transform_indices = @transform_3, window_bounds = array<i64: 16, 4>}, {pipeline_mode = #tpu.pipeline_mode<synchronous>, transform_indices = @transform_4, window_bounds = array<i64: 1, 4>}, {transform_indices = @transform_5, window_bounds = array<i64: 2, 4, 8>}]} {
    %c0 = arith.constant 0 : index
    %c0_0 = arith.constant 0 : index
    %c0_1 = arith.constant 0 : index
    %0 = vector.load %arg1[%c0, %c0_0, %c0_1] : memref<2x8x32xf32, #tpu.memory_space<vmem>>, vector<2x8x32xf32>
    %1 = vector.shape_cast %0 : vector<2x8x32xf32> to vector<16x32xf32>
    %2 = arith.truncf %1 : vector<16x32xf32> to vector<16x32xbf16>
    %c0_2 = arith.constant 0 : index
    %c0_3 = arith.constant 0 : index
    %3 = vector.load %arg2[%c0_2, %c0_3] : memref<32x16xbf16, #tpu.memory_space<vmem>>, vector<32x16xbf16>
    %cst = arith.constant dense<0.000000e+00> : vector<16x16xf32>
    %4 = tpu.matmul %2, %3, %cst {dimension_numbers = #tpu.dot_dimension_numbers<[1], [0], [0], [1], [0, 0, 1, 1], [], []>} : vector<16x32xbf16>, vector<32x16xbf16>, vector<16x16xf32> -> vector<16x16xf32>
    %c0_4 = arith.constant 0 : index
    %c0_5 = arith.constant 0 : index
    %5 = vector.load %arg3[%c0_4, %c0_5] : memref<1x16xf32, #tpu.memory_space<vmem>>, vector<1x16xf32>
    %6 = vector.broadcast %5 : vector<1x16xf32> to vector<16x16xf32>
    %7 = arith.addf %4, %6 : vector<16x16xf32>
    %8 = math.tanh %7 : vector<16x16xf32>
    %c0_6 = arith.constant 0 : index
    %c0_7 = arith.constant 0 : index
    %9 = vector.load %arg4[%c0_6, %c0_7] : memref<16x4xf32, #tpu.memory_space<vmem>>, vector<16x4xf32>
    %cst_8 = arith.constant dense<0.000000e+00> : vector<16x4xf32>
    %10 = tpu.matmul %8, %9, %cst_8 {dimension_numbers = #tpu.dot_dimension_numbers<[1], [0], [0], [1], [0, 0, 1, 1], [], []>} : vector<16x16xf32>, vector<16x4xf32>, vector<16x4xf32> -> vector<16x4xf32>
    %c0_9 = arith.constant 0 : index
    %c0_10 = arith.constant 0 : index
    %11 = vector.load %arg5[%c0_9, %c0_10] : memref<1x4xf32, #tpu.memory_space<vmem>>, vector<1x4xf32>
    %12 = vector.broadcast %11 : vector<1x4xf32> to vector<16x4xf32>
    %13 = arith.addf %10, %12 : vector<16x4xf32>
    %14 = vector.shape_cast %13 : vector<16x4xf32> to vector<2x8x4xf32>
    %15 = tpu.transpose %14, [0, 2, 1] : vector<2x8x4xf32> -> vector<2x4x8xf32>
    %cst_11 = arith.constant dense<0xFF800000> : vector<2x4xf32>
    %16 = vector.multi_reduction <maximumf>, %15, %cst_11 [2] : vector<2x4x8xf32> to vector<2x4xf32>
    %17 = vector.shape_cast %16 : vector<2x4xf32> to vector<2x4x1xf32>
    %18 = vector.broadcast %17 : vector<2x4x1xf32> to vector<2x4x8xf32>
    %19 = arith.subf %15, %18 : vector<2x4x8xf32>
    %20 = math.exp %19 : vector<2x4x8xf32>
    %cst_12 = arith.constant dense<0.000000e+00> : vector<2x4xf32>
    %21 = vector.multi_reduction <add>, %20, %cst_12 [2] : vector<2x4x8xf32> to vector<2x4xf32>
    %22 = vector.shape_cast %21 : vector<2x4xf32> to vector<2x4x1xf32>
    %23 = tpu.reciprocal %22 {approx = true} : vector<2x4x1xf32> -> vector<2x4x1xf32>
    %24 = vector.broadcast %23 : vector<2x4x1xf32> to vector<2x4x8xf32>
    %25 = arith.mulf %20, %24 : vector<2x4x8xf32>
    %c0_13 = arith.constant 0 : index
    %c0_14 = arith.constant 0 : index
    %c0_15 = arith.constant 0 : index
    %26 = vector.load %arg6[%c0_13, %c0_14, %c0_15] : memref<2x4x8xf32, #tpu.memory_space<vmem>>, vector<2x4x8xf32>
    tpu.vector_store %arg6[%c0_13, %c0_14, %c0_15], %25 {strides = array<i32>} : memref<2x4x8xf32, #tpu.memory_space<vmem>>, vector<2x4x8xf32>,
    return
  }
  func.func @transform_0(%arg0: i32) -> (i32, i32, i32) {
    %c0_i32 = arith.constant 0 : i32
    %c0_i32_0 = arith.constant 0 : i32
    %c0_i32_1 = arith.constant 0 : i32
    return %arg0, %c0_i32, %c0_i32_0 : i32, i32, i32
  }
  func.func @transform_1(%arg0: i32) -> (i32, i32) {
    %c0_i32 = arith.constant 0 : i32
    %c0_i32_0 = arith.constant 0 : i32
    %c0_i32_1 = arith.constant 0 : i32
    return %c0_i32, %c0_i32_0 : i32, i32
  }
  func.func @transform_2(%arg0: i32) -> (i32, i32) {
    %c0_i32 = arith.constant 0 : i32
    %c0_i32_0 = arith.constant 0 : i32
    %c0_i32_1 = arith.constant 0 : i32
    return %c0_i32, %c0_i32_0 : i32, i32
  }
  func.func @transform_3(%arg0: i32) -> (i32, i32) {
    %c0_i32 = arith.constant 0 : i32
    %c0_i32_0 = arith.constant 0 : i32
    %c0_i32_1 = arith.constant 0 : i32
    return %c0_i32, %c0_i32_0 : i32, i32
  }
  func.func @transform_4(%arg0: i32) -> (i32, i32) {
    %c0_i32 = arith.constant 0 : i32
    %c0_i32_0 = arith.constant 0 : i32
    %c0_i32_1 = arith.constant 0 : i32
    return %c0_i32, %c0_i32_0 : i32, i32
  }
  func.func @transform_5(%arg0: i32) -> (i32, i32, i32) {
    %c0_i32 = arith.constant 0 : i32
    %c0_i32_0 = arith.constant 0 : i32
    %c0_i32_1 = arith.constant 0 : i32
    return %arg0, %c0_i32, %c0_i32_0 : i32, i32, i32
  }
}

</mosaic_0001>

<llo_original>
// kernel: tpu_custom_call.1
$region0: #{tpu_custom_call.1}
  #allocation0 [shape = 'u32[]', space=smem, size = 0x4, offset = 0x4, fixed_abs, tag = 'smem constant byte address 0x4 - core index']
  #allocation1 [shape = 'u32[144,128]{1,0:T(1,128)}', space=vmem, size = 0x12000, scoped, tag = 'internal scratch']
  %s0 = inlined_call_operand.vmem [shape: f32[2,8,32], index: 0, kind: input, shape index: {}]
  %s1 = inlined_call_operand.vmem [shape: bf16[32,16], index: 1, kind: input, shape index: {}]
  %s2 = inlined_call_operand.vmem [shape: f32[1,16], index: 2, kind: input, shape index: {}]
  %s3 = inlined_call_operand.vmem [shape: f32[16,4], index: 3, kind: input, shape index: {}]
  %s4 = inlined_call_operand.vmem [shape: f32[1,4], index: 4, kind: input, shape index: {}]
  %s5 = inlined_call_operand.hbm [shape: f32[2,4,8], index: 5, kind: output, shape index: {}]
  %s6 = sld [smem:[#allocation0]]
  $region30: #{tpu_custom_call.1} parent=0
    _
  %s8 = ssub.s32 1, %s6
  %s9 = scalar_select 0, %s8, %s6
  $region1: #{tpu_custom_call.1} parent=0
    #allocation2 [shape = 'u8[4096]{0}', space=vmem, size = 0x1000, scoped, tag = 'output window, operand 0, single buffered']
    #allocation3 [shape = 's32[1]{0}', space=sflag, size = 0x4, scoped, tag = 'scoped memory for tpu_custom_call.1']
    %10 = vsyncpa [#allocation3], 0
    // Predicated region
    $region2: #{tpu_custom_call.1} parent=1 // pred_check
      _
    $region3: #{tpu_custom_call.1} parent=1 // pred_check_branch
      %12 = sbr.rel (0) target = $region5
    $region4: #{tpu_custom_call.1} parent=1 // pred_region
      _
    $region5: #{tpu_custom_call.1} parent=1 // pred_fallthru
      _
    // Predicated region
    $region6: #{tpu_custom_call.1} parent=1 // pred_check
      _
    $region7: #{tpu_custom_call.1} parent=1 // pred_check_branch
      %14 = sbr.rel (0) target = $region9
    $region8: #{tpu_custom_call.1} parent=1 // pred_region
      _
    $region9: #{tpu_custom_call.1} parent=1 // pred_fallthru
      _
    // Predicated region
    $region10: #{tpu_custom_call.1} parent=1 // pred_check
      _
    $region11: #{tpu_custom_call.1} parent=1 // pred_check_branch
      %16 = sbr.rel (0) target = $region13
    $region12: #{tpu_custom_call.1} parent=1 // pred_region
      _
    $region13: #{tpu_custom_call.1} parent=1 // pred_fallthru
      _
    // Predicated region
    $region14: #{tpu_custom_call.1} parent=1 // pred_check
      _
    $region15: #{tpu_custom_call.1} parent=1 // pred_check_branch
      %18 = sbr.rel (0) target = $region17
    $region16: #{tpu_custom_call.1} parent=1 // pred_region
      _
    $region17: #{tpu_custom_call.1} parent=1 // pred_fallthru
      _
    // Predicated region
    $region18: #{tpu_custom_call.1} parent=1 // pred_check
      _
    $region19: #{tpu_custom_call.1} parent=1 // pred_check_branch
      %20 = sbr.rel (0) target = $region21
    $region20: #{tpu_custom_call.1} parent=1 // pred_region
      _
    $region21: #{tpu_custom_call.1} parent=1 // pred_fallthru
      _
    %v22 = vld [vmem:[%s0] sm:$0xff]
    %v23 = vld [vmem:[%s0 + $0x8] sm:$0xff]
    %v24 = vpack.c.bf16 %v23, %v22
    %v25 = vld [vmem:[%s1] sm:$0xf]
    %v26 = vld [vmem:[%s1 + $0x4] sm:$0xf]
    %v27 = vld [vmem:[%s1 + $0x8] sm:$0xf]
    %v28 = vld [vmem:[%s1 + $0xc] sm:$0xf]
    %v29 = vld [vmem:[%s2] sm:$0x1]
    %v31 = vlaneseq
    %v32 = vshrl.u32 %v31, 7
    %v33 = vsub.s32 0, %v32
    %v34 = vrot.slane %v29, %v33
    %v40 = vunpack.c.l.b16 %v25
    %v41 = vunpack.c.l.b16 %v26
    %v42 = vunpack.c.l.b16 %v27
    %v43 = vunpack.c.l.b16 %v28
    %v44 = vpack.c.b16 %v41, %v40
    %v45 = vpack.c.b16 %v43, %v42
    %vm48 = vcmask 261120
    %v50 = vsel %vm48, %v24, 0
    %52 = vmatprep.subr.bf16.mxu0 0
    %53 = vmatpush1.bf16.msra.mxu0 %v44
    %54 = vmatprep.subr.bf16.mxu0 0
    %55 = vmatpush1.bf16.msra.mxu0 %v45
    %56 = vmatprep.subr.bf16.mxu0 0
    %57 = vmatpush1.bf16.msra.mxu0 0
    %58 = vmatprep.subr.bf16.mxu0 0
    %59 = vmatpush1.bf16.msra.mxu0 0
    %60 = vmatprep.subr.bf16.mxu0 0
    %61 = vmatpush1.bf16.msra.mxu0 0
    %62 = vmatprep.subr.bf16.mxu0 0
    %63 = vmatpush1.bf16.msra.mxu0 0
    %64 = vmatprep.subr.bf16.mxu0 0
    %65 = vmatpush1.bf16.msra.mxu0 0
    %66 = vmatprep.subr.bf16.mxu0 0
    %67 = vmatpush1.bf16.msra.mxu0 0
    %68 = vmatprep.subr.bf16.mxu0 0
    %69 = vmatpush1.bf16.msra.mxu0 0
    %70 = vmatprep.subr.bf16.mxu0 0
    %71 = vmatpush1.bf16.msra.mxu0 0
    %72 = vmatprep.subr.bf16.mxu0 0
    %73 = vmatpush1.bf16.msra.mxu0 0
    %74 = vmatprep.subr.bf16.mxu0 0
    %75 = vmatpush1.bf16.msra.mxu0 0
    %76 = vmatprep.subr.bf16.mxu0 0
    %77 = vmatpush1.bf16.msra.mxu0 0
    %78 = vmatprep.subr.bf16.mxu0 0
    %79 = vmatpush1.bf16.msra.mxu0 0
    %80 = vmatprep.subr.bf16.mxu0 0
    %81 = vmatpush1.bf16.msra.mxu0 0
    %82 = vmatprep.subr.bf16.mxu0 0
    %83 = vmatpush1.bf16.msra.mxu0 0
    %84 = vmatprep.mubr.bf16.mxu0 0
    %85 = vmatmul.mubr.bf16.gmra.mrb[0].mxu0 %v50
    %v86 = vpop.f32.mrb[0].mxu0
    %v87 = vadd.f32 %v34, %v86
    %v88 = vpop.f32.mrb[0].mxu0
    %v89 = vpop.f32.mrb[0].mxu0
    %v90 = vadd.f32 %v34, %v89
    %v91 = vpop.f32.mrb[0].mxu0
    %92 = vdwg.mxu0
    %v93 = vtanh.pop %v87
    %v94 = vtanh.pop %v90
    %v95 = vld [vmem:[%s3] sm:$0xff]
    %v96 = vld [vmem:[%s3 + $0x8] sm:$0xff]
    %v97 = vld [vmem:[%s4] sm:$0x1]
    %v99 = vlaneseq
    %v100 = vshrl.u32 %v99, 7
    %v101 = vsub.s32 0, %v100
    %v102 = vrot.slane %v97, %v101
    %vm104 = vcmask 130048
    %v106 = vsel %vm104, %v93, 0
    %v109 = vsel %vm104, %v94, 0
    %111 = vmatprep.subr.mxu0 0.0
    %112 = vmatpush1.msra.mxu0 %v95
    %113 = vmatprep.subr.mxu0 0.0
    %114 = vmatpush1.msra.mxu0 %v96
    %115 = vmatprep.subr.mxu0 0.0
    %116 = vmatpush1.msra.mxu0 0.0
    %117 = vmatprep.subr.mxu0 0.0
    %118 = vmatpush1.msra.mxu0 0.0
    %119 = vmatprep.subr.mxu0 0.0
    %120 = vmatpush1.msra.mxu0 0.0
    %121 = vmatprep.subr.mxu0 0.0
    %122 = vmatpush1.msra.mxu0 0.0
    %123 = vmatprep.subr.mxu0 0.0
    %124 = vmatpush1.msra.mxu0 0.0
    %125 = vmatprep.subr.mxu0 0.0
    %126 = vmatpush1.msra.mxu0 0.0
    %127 = vmatprep.subr.mxu0 0.0
    %128 = vmatpush1.msra.mxu0 0.0
    %129 = vmatprep.subr.mxu0 0.0
    %130 = vmatpush1.msra.mxu0 0.0
    %131 = vmatprep.subr.mxu0 0.0
    %132 = vmatpush1.msra.mxu0 0.0
    %133 = vmatprep.subr.mxu0 0.0
    %134 = vmatpush1.msra.mxu0 0.0
    %135 = vmatprep.subr.mxu0 0.0
    %136 = vmatpush1.msra.mxu0 0.0
    %137 = vmatprep.subr.mxu0 0.0
    %138 = vmatpush1.msra.mxu0 0.0
    %139 = vmatprep.subr.mxu0 0.0
    %140 = vmatpush1.msra.mxu0 0.0
    %141 = vmatprep.subr.mxu0 0.0
    %142 = vmatpush1.msra.mxu0 0.0
    %143 = vmatprep.subr.mxu0 0.0
    %144 = vmatpush1.msra.mxu0 0.0
    %145 = vmatprep.subr.mxu0 0.0
    %146 = vmatpush1.msra.mxu0 0.0
    %147 = vmatprep.subr.mxu0 0.0
    %148 = vmatpush1.msra.mxu0 0.0
    %149 = vmatprep.subr.mxu0 0.0
    %150 = vmatpush1.msra.mxu0 0.0
    %151 = vmatprep.subr.mxu0 0.0
    %152 = vmatpush1.msra.mxu0 0.0
    %153 = vmatprep.subr.mxu0 0.0
    %154 = vmatpush1.msra.mxu0 0.0
    %155 = vmatprep.subr.mxu0 0.0
    %156 = vmatpush1.msra.mxu0 0.0
    %157 = vmatprep.subr.mxu0 0.0
    %158 = vmatpush1.msra.mxu0 0.0
    %159 = vmatprep.subr.mxu0 0.0
    %160 = vmatpush1.msra.mxu0 0.0
    %161 = vmatprep.subr.mxu0 0.0
    %162 = vmatpush1.msra.mxu0 0.0
    %163 = vmatprep.subr.mxu0 0.0
    %164 = vmatpush1.msra.mxu0 0.0
    %165 = vmatprep.subr.mxu0 0.0
    %166 = vmatpush1.msra.mxu0 0.0
    %167 = vmatprep.subr.mxu0 0.0
    %168 = vmatpush1.msra.mxu0 0.0
    %169 = vmatprep.subr.mxu0 0.0
    %170 = vmatpush1.msra.mxu0 0.0
    %171 = vmatprep.subr.mxu0 0.0
    %172 = vmatpush1.msra.mxu0 0.0
    %173 = vmatprep.subr.mxu0 0.0
    %174 = vmatpush1.msra.mxu0 0.0
    %175 = vmatprep.mubr.f32.mxu0 0.0
    %176 = vmatmul.mubr.f32.gmra.mrb[0].mxu0 %v106
    %v177 = vpop.f32.mrb[0].mxu0
    %v178 = vadd.f32 %v102, %v177
    %v179 = vpop.f32.mrb[0].mxu0
    %180 = vmatprep.mubr.f32.mxu0 0.0
    %181 = vmatmul.mubr.f32.gmra.mrb[0].mxu0 %v109
    %v182 = vpop.f32.mrb[0].mxu0
    %v183 = vadd.f32 %v102, %v182
    %v184 = vpop.f32.mrb[0].mxu0
    %185 = vdwg.mxu0
    %186 = vxpose.xlu0.b32.start [1/16] %v178, 128
    %187 = vxpose.xlu0.b32.cont [2/16] 0.0, 128
    %188 = vxpose.xlu0.b32.cont [3/16] 0.0, 128
    %189 = vxpose.xlu0.b32.cont [4/16] 0.0, 128
    %190 = vxpose.xlu0.b32.cont [5/16] 0.0, 128
    %191 = vxpose.xlu0.b32.cont [6/16] 0.0, 128
    %192 = vxpose.xlu0.b32.cont [7/16] 0.0, 128
    %193 = vxpose.xlu0.b32.cont [8/16] 0.0, 128
    %194 = vxpose.xlu0.b32.cont [9/16] 0.0, 128
    %195 = vxpose.xlu0.b32.cont [10/16] 0.0, 128
    %196 = vxpose.xlu0.b32.cont [11/16] 0.0, 128
    %197 = vxpose.xlu0.b32.cont [12/16] 0.0, 128
    %198 = vxpose.xlu0.b32.cont [13/16] 0.0, 128
    %199 = vxpose.xlu0.b32.cont [14/16] 0.0, 128
    %200 = vxpose.xlu0.b32.cont [15/16] 0.0, 128
    %201 = vxpose.xlu0.b32.end [16/16] 0.0, 128
    %v202 = vpop.trf.xlu0
    %v203 = vpop.trf.xlu0
    %v204 = vpop.trf.xlu0
    %v205 = vpop.trf.xlu0
    %v206 = vpop.trf.xlu0
    %v207 = vpop.trf.xlu0
    %v208 = vpop.trf.xlu0
    %v209 = vpop.trf.xlu0
    %v210 = vpop.trf.xlu0
    %v211 = vpop.trf.xlu0
    %v212 = vpop.trf.xlu0
    %v213 = vpop.trf.xlu0
    %v214 = vpop.trf.xlu0
    %v215 = vpop.trf.xlu0
    %v216 = vpop.trf.xlu0
    %v217 = vpop.trf.xlu0
    %218 = vxpose.xlu0.b32.start [1/16] %v183, 128
    %219 = vxpose.xlu0.b32.cont [2/16] 0.0, 128
    %220 = vxpose.xlu0.b32.cont [3/16] 0.0, 128
    %221 = vxpose.xlu0.b32.cont [4/16] 0.0, 128
    %222 = vxpose.xlu0.b32.cont [5/16] 0.0, 128
    %223 = vxpose.xlu0.b32.cont [6/16] 0.0, 128
    %224 = vxpose.xlu0.b32.cont [7/16] 0.0, 128
    %225 = vxpose.xlu0.b32.cont [8/16] 0.0, 128
    %226 = vxpose.xlu0.b32.cont [9/16] 0.0, 128
    %227 = vxpose.xlu0.b32.cont [10/16] 0.0, 128
    %228 = vxpose.xlu0.b32.cont [11/16] 0.0, 128
    %229 = vxpose.xlu0.b32.cont [12/16] 0.0, 128
    %230 = vxpose.xlu0.b32.cont [13/16] 0.0, 128
    %231 = vxpose.xlu0.b32.cont [14/16] 0.0, 128
    %232 = vxpose.xlu0.b32.cont [15/16] 0.0, 128
    %233 = vxpose.xlu0.b32.end [16/16] 0.0, 128
    %v234 = vpop.trf.xlu0
    %v235 = vpop.trf.xlu0
    %v236 = vpop.trf.xlu0
    %v237 = vpop.trf.xlu0
    %v238 = vpop.trf.xlu0
    %v239 = vpop.trf.xlu0
    %v240 = vpop.trf.xlu0
    %v241 = vpop.trf.xlu0
    %v242 = vpop.trf.xlu0
    %v243 = vpop.trf.xlu0
    %v244 = vpop.trf.xlu0
    %v245 = vpop.trf.xlu0
    %v246 = vpop.trf.xlu0
    %v247 = vpop.trf.xlu0
    %v248 = vpop.trf.xlu0
    %v249 = vpop.trf.xlu0
    %vm250 = vcmask 60416
    %v251 = vsel %vm250, %v202, -inf
    %252 = vmax.xlane.f32.xlu0 %v251
    %v253 = vpop.xlane.xlu0 %252
    %v254 = vsel %vm250, %v234, -inf
    %255 = vmax.xlane.f32.xlu0 %v254
    %v256 = vpop.xlane.xlu0 %255
    %v257 = vsub.f32 %v202, %v253
    %v258 = vsub.f32 %v234, %v256
    %v259 = vmul.f32 %v257, 1.442695
    %v260 = vpow.pop %v259
    %v261 = vmul.f32 %v258, 1.442695
    %v262 = vpow.pop %v261
    %v263 = vsel %vm250, %v260, 0.0
    %264 = vadd.xlane.f32.xlu0 %v263
    %v265 = vpop.xlane.xlu0 %264
    %v266 = vsel %vm250, %v262, 0.0
    %267 = vadd.xlane.f32.xlu0 %v266
    %v268 = vpop.xlane.xlu0 %267
    %v269 = vrcp.pop %v265
    %v270 = vrcp.pop %v268
    %v271 = vmul.f32 %v260, %v269
    %v272 = vmul.f32 %v262, %v270
    %273 = vst.msk [vmem:[#allocation2] sm:$0xf] %vm250, %v271
    %274 = vst.msk [vmem:[#allocation2 + $0x4] sm:$0xf] %vm250, %v272
    // Predicated region
    $region22: #{tpu_custom_call.1} parent=1 // pred_check
      _
    $region23: #{tpu_custom_call.1} parent=1 // pred_check_branch
      %276 = sbr.rel (0) target = $region25
    $region24: #{tpu_custom_call.1} parent=1 // pred_region
      %s278 = ssub.s32 128, 128
      %279 = vsyncadd [#allocation3], %s278
      %s280 = sshll.u32 [#allocation2], 4
      %s281 = int_to_ptr.vmem [resolvable:$true] %s280
      %286 = dma.vmem_to_hbm [thread:$0]  %s281, 128, %s5, [#allocation3], 64, 64, 4
    $region25: #{tpu_custom_call.1} parent=1 // pred_fallthru
      _
    // Predicated region
    $region26: #{tpu_custom_call.1} parent=1 // pred_check
      _
    $region27: #{tpu_custom_call.1} parent=1 // pred_check_branch
      %288 = sbr.rel (0) target = $region29
    $region28: #{tpu_custom_call.1} parent=1 // pred_region
      %289 = dma.done [#allocation3], 128
    $region29: #{tpu_custom_call.1} parent=1 // pred_fallthru
      _
    %290 = vsyncpa [#allocation3], 1

</llo_original>
